<compile_context>
chip_gen: v7x
topology: tpu7x:2x2x1
jax: 0.10.0
libtpu: 0.0.40
codegen_flags: <defaults>
</compile_context>

<pallas_src>
import functools

import jax
import jax.numpy as jnp
from jax import lax
from jax.experimental import pallas as pl
from jax.experimental.pallas import tpu as pltpu


def _proto_loss_kernel(e_ref, t_ref, p_ref, psq_ref, partial_ref, logits_ref,
                       *, n_valid, c_valid, mxu_bf16):
    i = pl.program_id(0)
    tm, d = e_ref.shape
    c_pad = p_ref.shape[0]

    e = e_ref[...].astype(jnp.float32)          # (tm, D)
    p = p_ref[...].astype(jnp.float32)          # (C_pad, D)
    t = t_ref[...]                              # (tm, 1) int32
    p_sq = psq_ref[...].astype(jnp.float32)     # (1, C_pad)  (precomputed)

    # ||e||^2 per row.
    e_sq = jnp.sum(e * e, axis=-1, keepdims=True)                    # (tm, 1)

    # Cross term e.p^T: contract over D directly (no p.T relayout feeding the
    # MXU).  Optionally feed bf16 operands with f32 accumulation (big win on
    # v5e's MXU; gated because of cancellation in the cdist expansion).
    if mxu_bf16:
        lhs = e_ref[...].astype(jnp.bfloat16)
        rhs = p_ref[...].astype(jnp.bfloat16)
    else:
        lhs, rhs = e, p
    cross = lax.dot_general(
        lhs, rhs,
        dimension_numbers=(((1,), (1,)), ((), ())),
        preferred_element_type=jnp.float32)                          # (tm, C_pad)

    # Pairwise squared L2: ||e||^2 - 2 e.p^T + ||p||^2 (clamped, then sqrt).
    sq_dists = jnp.maximum(e_sq - 2.0 * cross + p_sq, 0.0)
    dists = jnp.sqrt(sq_dists)                                       # (tm, C_pad)
    neg_dists = -dists                                               # logits

    # Lane-dense store (C_pad is a multiple of 128 -> unmasked vst).
    logits_ref[...] = neg_dists.astype(logits_ref.dtype)

    # Cross entropy restricted to the first c_valid (real) classes.
    col_ids = lax.broadcasted_iota(jnp.int32, (tm, c_pad), 1)
    col_valid = col_ids < c_valid
    masked = jnp.where(col_valid, neg_dists, jnp.float32(-1e30))
    m = jnp.max(masked, axis=-1, keepdims=True)                      # (tm, 1)
    lse = m + jnp.log(jnp.sum(jnp.exp(masked - m), axis=-1, keepdims=True))

    # target logit = -dist[target]  ->  per-example loss = lse + dist[target]
    onehot = (col_ids == t).astype(jnp.float32)
    target_dist = jnp.sum(dists * onehot, axis=-1, keepdims=True)    # (tm, 1)
    per_example = lse + target_dist                                  # (tm, 1)

    # Drop contributions from rows padded beyond the true batch size.
    row_ids = i * tm + lax.broadcasted_iota(jnp.int32, (tm, 1), 0)
    per_example = jnp.where(row_ids < n_valid, per_example, 0.0)

    # Per-tile partial sum, broadcast across a full (8, 128) block so the
    # store is a plain dense vst.  The wrapper reads element [0, 0] of each
    # tile and reduces; no resident accumulator -> the grid axis can be
    # "parallel" (both v7x TensorCores participate).
    tile_sum = jnp.sum(per_example, axis=0, keepdims=True)           # (1, 1)
    partial_ref[...] = jnp.broadcast_to(tile_sum, partial_ref.shape).astype(
        partial_ref.dtype)


def _pick_row_tile(n, d, c_pad, e_bytes, p_bytes, o_bytes, block_n,
                   budget=24 << 20):
    """Largest multiple-of-8 row tile <= block_n whose VMEM footprint fits.

    Budget covers the double-buffered pipelined blocks plus an estimate of the
    in-kernel f32 temporaries, with headroom under the 32 MiB scoped default
    (which also keeps v7x's 64 MiB physical VMEM comfortable).
    """
    tm = max(8, min(block_n, pl.cdiv(n, 8) * 8))
    tm = (tm // 8) * 8

    def est(t):
        pipelined = (2 * t * d * e_bytes        # embeddings tile (x2 buffers)
                     + 2 * t * 4                # targets tile
                     + 2 * c_pad * d * p_bytes  # resident prototypes
                     + 2 * c_pad * 4            # resident ||p||^2
                     + 2 * t * c_pad * o_bytes  # logits tile
                     + 2 * 8 * 128 * 4)         # partial-loss tile
        # f32 upcasts + ~5 (tm, C_pad) intermediates (cross/dists/masked/exp/...)
        temps = t * d * 4 + c_pad * d * 4 + 5 * t * c_pad * 4
        return pipelined + temps

    while tm > 8 and est(tm) > budget:
        tm -= 8
    return tm


def prototypical_loss(embeddings, targets, prototypes, *, block_n=1024,
                      mxu_bf16=False, logits_dtype=None):
    """Returns (loss, logits) matching PrototypicalLoss.forward.

    mxu_bf16:      feed bf16 operands to the MXU cross term (f32 accumulate).
    logits_dtype:  output dtype for logits (default f32).
    Passing bf16 embeddings/prototypes halves the input DMA width; compute
    stays f32 inside the kernel.
    """
    n, d = embeddings.shape
    c, d2 = prototypes.shape
    assert d == d2

    # Class dim padded to a multiple of 128 lanes -> dense logits stores.
    c_pad = pl.cdiv(c, 128) * 128
    if logits_dtype is None:
        logits_dtype = jnp.float32

    # Keep bf16 inputs bf16 at the DMA boundary (half-width reads); everything
    # else goes in as f32.
    e_dtype = jnp.bfloat16 if embeddings.dtype == jnp.bfloat16 else jnp.float32
    p_dtype = jnp.bfloat16 if prototypes.dtype == jnp.bfloat16 else jnp.float32

    tm = _pick_row_tile(n, d, c_pad,
                        jnp.dtype(e_dtype).itemsize,
                        jnp.dtype(p_dtype).itemsize,
                        jnp.dtype(logits_dtype).itemsize,
                        block_n)
    n_pad = pl.cdiv(n, tm) * tm
    num_tiles = n_pad // tm
    grid = (num_tiles,)

    e = embeddings.astype(e_dtype)
    p = prototypes.astype(p_dtype)
    t = targets.astype(jnp.int32).reshape(n, 1)

    # ||p||^2 hoisted out of the kernel: computed once here (grid-invariant
    # input) instead of being recomputed on every grid step.
    pf32 = prototypes.astype(jnp.float32)
    p_sq = jnp.sum(pf32 * pf32, axis=-1)[None, :]                    # (1, C)

    if n_pad != n:
        e = jnp.pad(e, ((0, n_pad - n), (0, 0)))
        t = jnp.pad(t, ((0, n_pad - n), (0, 0)))
    if c_pad != c:
        p = jnp.pad(p, ((0, c_pad - c), (0, 0)))
        p_sq = jnp.pad(p_sq, ((0, 0), (0, c_pad - c)))

    kernel = functools.partial(
        _proto_loss_kernel, n_valid=n, c_valid=c, mxu_bf16=mxu_bf16)

    partials, logits_padded = pl.pallas_call(
        kernel,
        out_shape=(
            jax.ShapeDtypeStruct((8 * num_tiles, 128), jnp.float32),
            jax.ShapeDtypeStruct((n_pad, c_pad), logits_dtype),
        ),
        grid_spec=pltpu.PrefetchScalarGridSpec(
            num_scalar_prefetch=0,
            grid=grid,
            in_specs=[
                pl.BlockSpec((tm, d), lambda i: (i, 0)),       # embeddings tile
                pl.BlockSpec((tm, 1), lambda i: (i, 0)),       # targets tile
                pl.BlockSpec((c_pad, d), lambda i: (0, 0)),    # prototypes (resident)
                pl.BlockSpec((1, c_pad), lambda i: (0, 0)),    # ||p||^2 (resident)
            ],
            out_specs=(
                pl.BlockSpec((8, 128), lambda i: (i, 0)),      # per-tile partial loss
                pl.BlockSpec((tm, c_pad), lambda i: (i, 0)),   # logits tile
            ),
        ),
        compiler_params=pltpu.CompilerParams(
            dimension_semantics=("parallel",)),   # no resident accumulator ->
                                                  # row tiles shard across TCs
    )(e, t, p, p_sq)

    # Final reduction + mean in the wrapper (padded rows contributed 0).
    loss = jnp.sum(partials[::8, 0]) * jnp.float32(1.0 / n)
    return loss, logits_padded[:n, :c]


def _reference(embeddings, targets, prototypes):
    # Pure-JAX reference (mirrors torch.cdist + cross_entropy).
    diff = embeddings[:, None, :] - prototypes[None, :, :]
    dists = jnp.sqrt(jnp.sum(diff * diff, axis=-1))
    logits = -dists
    logp = jax.nn.log_softmax(logits, axis=-1)
    loss = -jnp.mean(logp[jnp.arange(embeddings.shape[0]), targets])
    return loss, logits


if __name__ == "__main__":
    key = jax.random.PRNGKey(0)
    k1, k2, k3 = jax.random.split(key, 3)

    N, C, D = 8, 4, 32  # queries, way-count, feature dim
    embeddings = jax.random.normal(k1, (N, D), dtype=jnp.float32)
    prototypes = jax.random.normal(k2, (C, D), dtype=jnp.float32)
    targets = jax.random.randint(k3, (N,), 0, C, dtype=jnp.int32)

    loss, logits = prototypical_loss(embeddings, targets, prototypes)
    jax.block_until_ready((loss, logits))

    ref_loss, ref_logits = _reference(embeddings, targets, prototypes)
    assert jnp.allclose(loss, ref_loss, atol=1e-5, rtol=1e-5)
    assert jnp.allclose(logits, ref_logits, atol=1e-5, rtol=1e-5)

    print("KERNEL_OK")
</pallas_src>

<mosaic_0001>
module attributes {stable_mosaic.version = 11 : i64} {
  func.func @_proto_loss_kernel(%arg0: i32, %arg1: memref<8x32xf32, #tpu.memory_space<vmem>>, %arg2: memref<8x1xi32, #tpu.memory_space<vmem>>, %arg3: memref<128x32xf32, #tpu.memory_space<vmem>>, %arg4: memref<1x128xf32, #tpu.memory_space<vmem>>, %arg5: memref<8x128xf32, #tpu.memory_space<vmem>>, %arg6: memref<8x128xf32, #tpu.memory_space<vmem>>) attributes {dimension_semantics = [#tpu.dimension_semantics<parallel>], iteration_bounds = array<i64: 1>, scalar_prefetch = 0 : i64, scratch_operands = 0 : i64, tpu.core_type = #tpu.core_type<tc>, window_params = [{transform_indices = @transform_0, window_bounds = array<i64: 8, 32>}, {transform_indices = @transform_1, window_bounds = array<i64: 8, 1>}, {pipeline_mode = #tpu.pipeline_mode<synchronous>, transform_indices = @transform_2, window_bounds = array<i64: 128, 32>}, {pipeline_mode = #tpu.pipeline_mode<synchronous>, transform_indices = @transform_3, window_bounds = array<i64: 1, 128>}, {transform_indices = @transform_4, window_bounds = array<i64: 8, 128>}, {transform_indices = @transform_5, window_bounds = array<i64: 8, 128>}]} {
    %c0 = arith.constant 0 : index
    %c0_0 = arith.constant 0 : index
    %0 = vector.load %arg1[%c0, %c0_0] : memref<8x32xf32, #tpu.memory_space<vmem>>, vector<8x32xf32>
    %c0_1 = arith.constant 0 : index
    %c0_2 = arith.constant 0 : index
    %1 = vector.load %arg3[%c0_1, %c0_2] : memref<128x32xf32, #tpu.memory_space<vmem>>, vector<128x32xf32>
    %c0_3 = arith.constant 0 : index
    %c0_4 = arith.constant 0 : index
    %2 = vector.load %arg2[%c0_3, %c0_4] : memref<8x1xi32, #tpu.memory_space<vmem>>, vector<8x1xi32>
    %c0_5 = arith.constant 0 : index
    %c0_6 = arith.constant 0 : index
    %3 = vector.load %arg4[%c0_5, %c0_6] : memref<1x128xf32, #tpu.memory_space<vmem>>, vector<1x128xf32>
    %4 = arith.mulf %0, %0 : vector<8x32xf32>
    %cst = arith.constant dense<0.000000e+00> : vector<8xf32>
    %5 = vector.multi_reduction <add>, %4, %cst [1] : vector<8x32xf32> to vector<8xf32>
    %6 = vector.shape_cast %5 : vector<8xf32> to vector<8x1xf32>
    %cst_7 = arith.constant dense<0.000000e+00> : vector<8x128xf32>
    %7 = tpu.matmul %0, %1, %cst_7 {dimension_numbers = #tpu.dot_dimension_numbers<[1], [1], [0], [0], [0, 0, 1, 0], [], []>} : vector<8x32xf32>, vector<128x32xf32>, vector<8x128xf32> -> vector<8x128xf32>
    %cst_8 = arith.constant 2.000000e+00 : f32
    %8 = vector.broadcast %cst_8 : f32 to vector<8x128xf32>
    %9 = arith.mulf %8, %7 : vector<8x128xf32>
    %10 = vector.broadcast %6 : vector<8x1xf32> to vector<8x128xf32>
    %11 = arith.subf %10, %9 : vector<8x128xf32>
    %12 = vector.broadcast %3 : vector<1x128xf32> to vector<8x128xf32>
    %13 = arith.addf %11, %12 : vector<8x128xf32>
    %cst_9 = arith.constant 0.000000e+00 : f32
    %14 = vector.broadcast %cst_9 : f32 to vector<8x128xf32>
    %15 = arith.maximumf %13, %14 : vector<8x128xf32>
    %16 = math.sqrt %15 : vector<8x128xf32>
    %cst_10 = arith.constant 0.000000e+00 : f32
    %17 = vector.broadcast %cst_10 : f32 to vector<8x128xf32>
    %18 = arith.subf %17, %16 : vector<8x128xf32>
    %c0_11 = arith.constant 0 : index
    %c0_12 = arith.constant 0 : index
    %19 = vector.load %arg6[%c0_11, %c0_12] : memref<8x128xf32, #tpu.memory_space<vmem>>, vector<8x128xf32>
    tpu.vector_store %arg6[%c0_11, %c0_12], %18 {strides = array<i32>} : memref<8x128xf32, #tpu.memory_space<vmem>>, vector<8x128xf32>,
    %20 = tpu.iota {dimensions = array<i32: 1>} : vector<8x128xi32>
    %c4_i32 = arith.constant 4 : i32
    %21 = vector.broadcast %c4_i32 : i32 to vector<8x128xi32>
    %22 = arith.cmpi slt, %20, %21 : vector<8x128xi32>
    %cst_13 = arith.constant -1.000000e+30 : f32
    %23 = vector.broadcast %cst_13 : f32 to vector<8x128xf32>
    %24 = arith.select %22, %18, %23 : vector<8x128xi1>, vector<8x128xf32>
    %cst_14 = arith.constant dense<0xFF800000> : vector<8xf32>
    %25 = vector.multi_reduction <maximumf>, %24, %cst_14 [1] : vector<8x128xf32> to vector<8xf32>
    %26 = vector.shape_cast %25 : vector<8xf32> to vector<8x1xf32>
    %27 = vector.broadcast %26 : vector<8x1xf32> to vector<8x128xf32>
    %28 = arith.subf %24, %27 : vector<8x128xf32>
    %29 = math.exp %28 : vector<8x128xf32>
    %cst_15 = arith.constant dense<0.000000e+00> : vector<8xf32>
    %30 = vector.multi_reduction <add>, %29, %cst_15 [1] : vector<8x128xf32> to vector<8xf32>
    %31 = vector.shape_cast %30 : vector<8xf32> to vector<8x1xf32>
    %32 = math.log %31 : vector<8x1xf32>
    %33 = arith.addf %26, %32 : vector<8x1xf32>
    %34 = vector.broadcast %2 : vector<8x1xi32> to vector<8x128xi32>
    %35 = arith.cmpi eq, %20, %34 : vector<8x128xi32>
    %36 = arith.extui %35 : vector<8x128xi1> to vector<8x128xi32>
    %37 = arith.sitofp %36 : vector<8x128xi32> to vector<8x128xf32>
    %38 = arith.mulf %16, %37 : vector<8x128xf32>
    %cst_16 = arith.constant dense<0.000000e+00> : vector<8xf32>
    %39 = vector.multi_reduction <add>, %38, %cst_16 [1] : vector<8x128xf32> to vector<8xf32>
    %40 = vector.shape_cast %39 : vector<8xf32> to vector<8x1xf32>
    %41 = arith.addf %33, %40 : vector<8x1xf32>
    %c8_i32 = arith.constant 8 : i32
    %42 = arith.muli %arg0, %c8_i32 : i32
    %43 = tpu.iota {dimensions = array<i32: 0>} : vector<8x1xi32>
    %44 = vector.broadcast %42 : i32 to vector<8x1xi32>
    %45 = arith.addi %44, %43 : vector<8x1xi32>
    %c8_i32_17 = arith.constant 8 : i32
    %46 = vector.broadcast %c8_i32_17 : i32 to vector<8x1xi32>
    %47 = arith.cmpi slt, %45, %46 : vector<8x1xi32>
    %cst_18 = arith.constant 0.000000e+00 : f32
    %48 = vector.broadcast %cst_18 : f32 to vector<8x1xf32>
    %49 = arith.select %47, %41, %48 : vector<8x1xi1>, vector<8x1xf32>
    %cst_19 = arith.constant dense<0.000000e+00> : vector<1xf32>
    %50 = vector.multi_reduction <add>, %49, %cst_19 [0] : vector<8x1xf32> to vector<1xf32>
    %51 = vector.shape_cast %50 : vector<1xf32> to vector<1x1xf32>
    %52 = vector.shape_cast %51 : vector<1x1xf32> to vector<1x1xf32>
    %53 = vector.broadcast %52 : vector<1x1xf32> to vector<8x128xf32>
    %c0_20 = arith.constant 0 : index
    %c0_21 = arith.constant 0 : index
    %54 = vector.load %arg5[%c0_20, %c0_21] : memref<8x128xf32, #tpu.memory_space<vmem>>, vector<8x128xf32>
    tpu.vector_store %arg5[%c0_20, %c0_21], %53 {strides = array<i32>} : memref<8x128xf32, #tpu.memory_space<vmem>>, vector<8x128xf32>,
    return
  }
  func.func @transform_0(%arg0: i32) -> (i32, i32) {
    %c0_i32 = arith.constant 0 : i32
    %c0_i32_0 = arith.constant 0 : i32
    return %arg0, %c0_i32 : i32, i32
  }
  func.func @transform_1(%arg0: i32) -> (i32, i32) {
    %c0_i32 = arith.constant 0 : i32
    %c0_i32_0 = arith.constant 0 : i32
    return %arg0, %c0_i32 : i32, i32
  }
  func.func @transform_2(%arg0: i32) -> (i32, i32) {
    %c0_i32 = arith.constant 0 : i32
    %c0_i32_0 = arith.constant 0 : i32
    %c0_i32_1 = arith.constant 0 : i32
    return %c0_i32, %c0_i32_0 : i32, i32
  }
  func.func @transform_3(%arg0: i32) -> (i32, i32) {
    %c0_i32 = arith.constant 0 : i32
    %c0_i32_0 = arith.constant 0 : i32
    %c0_i32_1 = arith.constant 0 : i32
    return %c0_i32, %c0_i32_0 : i32, i32
  }
  func.func @transform_4(%arg0: i32) -> (i32, i32) {
    %c0_i32 = arith.constant 0 : i32
    %c0_i32_0 = arith.constant 0 : i32
    return %arg0, %c0_i32 : i32, i32
  }
  func.func @transform_5(%arg0: i32) -> (i32, i32) {
    %c0_i32 = arith.constant 0 : i32
    %c0_i32_0 = arith.constant 0 : i32
    return %arg0, %c0_i32 : i32, i32
  }
}

</mosaic_0001>

<llo_original>
// kernel: tpu_custom_call.1
$region0: #{tpu_custom_call.1}
  #allocation0 [shape = 'u32[]', space=smem, size = 0x4, offset = 0x4, fixed_abs, tag = 'smem constant byte address 0x4 - core index']
  #allocation1 [shape = 'u32[144,128]{1,0:T(1,128)}', space=vmem, size = 0x12000, scoped, tag = 'internal scratch']
  %s0 = inlined_call_operand.vmem [shape: f32[8,32], index: 0, kind: input, shape index: {}]
  %s1 = inlined_call_operand.vmem [shape: s32[8,1], index: 1, kind: input, shape index: {}]
  %s2 = inlined_call_operand.vmem [shape: f32[128,32], index: 2, kind: input, shape index: {}]
  %s3 = inlined_call_operand.vmem [shape: f32[1,128], index: 3, kind: input, shape index: {}]
  %s4 = inlined_call_operand.hbm [shape: f32[8,128], index: 4, kind: output, shape index: {0}]
  %s5 = inlined_call_operand.hbm [shape: f32[8,128], index: 5, kind: output, shape index: {1}]
  %6 = xla_tuple %s4, %s5
  %s7 = sld [smem:[#allocation0]]
  $region34: #{tpu_custom_call.1} parent=0
    _
  %s9 = ssub.s32 1, %s7
  %s10 = scalar_select 0, %s9, %s7
  $region1: #{tpu_custom_call.1} parent=0
    #allocation2 [shape = 'u8[4096]{0}', space=vmem, size = 0x1000, scoped, tag = 'output window, operand 0, single buffered']
    #allocation3 [shape = 's32[1]{0}', space=sflag, size = 0x4, scoped, tag = 'scoped memory for tpu_custom_call.1']
    #allocation4 [shape = 'u8[4096]{0}', space=vmem, size = 0x1000, scoped, tag = 'output window, operand 1, single buffered']
    #allocation5 [shape = 's32[1]{0}', space=sflag, size = 0x4, scoped, tag = 'scoped memory for tpu_custom_call.1']
    %11 = vsyncpa [#allocation3], 0
    %12 = vsyncpa [#allocation5], 0
    // Predicated region
    $region2: #{tpu_custom_call.1} parent=1 // pred_check
      _
    $region3: #{tpu_custom_call.1} parent=1 // pred_check_branch
      %14 = sbr.rel (0) target = $region5
    $region4: #{tpu_custom_call.1} parent=1 // pred_region
      _
    $region5: #{tpu_custom_call.1} parent=1 // pred_fallthru
      _
    // Predicated region
    $region6: #{tpu_custom_call.1} parent=1 // pred_check
      _
    $region7: #{tpu_custom_call.1} parent=1 // pred_check_branch
      %16 = sbr.rel (0) target = $region9
    $region8: #{tpu_custom_call.1} parent=1 // pred_region
      _
    $region9: #{tpu_custom_call.1} parent=1 // pred_fallthru
      _
    // Predicated region
    $region10: #{tpu_custom_call.1} parent=1 // pred_check
      _
    $region11: #{tpu_custom_call.1} parent=1 // pred_check_branch
      %18 = sbr.rel (0) target = $region13
    $region12: #{tpu_custom_call.1} parent=1 // pred_region
      _
    $region13: #{tpu_custom_call.1} parent=1 // pred_fallthru
      _
    // Predicated region
    $region14: #{tpu_custom_call.1} parent=1 // pred_check
      _
    $region15: #{tpu_custom_call.1} parent=1 // pred_check_branch
      %20 = sbr.rel (0) target = $region17
    $region16: #{tpu_custom_call.1} parent=1 // pred_region
      _
    $region17: #{tpu_custom_call.1} parent=1 // pred_fallthru
      _
    %v21 = vld [vmem:[%s0] sm:$0xff]
    %v22 = vld [vmem:[%s2] sm:$0xff]
    %v23 = vld [vmem:[%s2 + $0x8] sm:$0xff]
    %v24 = vld [vmem:[%s2 + $0x10] sm:$0xff]
    %v25 = vld [vmem:[%s2 + $0x18] sm:$0xff]
    %v26 = vld [vmem:[%s2 + $0x20] sm:$0xff]
    %v27 = vld [vmem:[%s2 + $0x28] sm:$0xff]
    %v28 = vld [vmem:[%s2 + $0x30] sm:$0xff]
    %v29 = vld [vmem:[%s2 + $0x38] sm:$0xff]
    %v30 = vld [vmem:[%s2 + $0x40] sm:$0xff]
    %v31 = vld [vmem:[%s2 + $0x48] sm:$0xff]
    %v32 = vld [vmem:[%s2 + $0x50] sm:$0xff]
    %v33 = vld [vmem:[%s2 + $0x58] sm:$0xff]
    %v34 = vld [vmem:[%s2 + $0x60] sm:$0xff]
    %v35 = vld [vmem:[%s2 + $0x68] sm:$0xff]
    %v36 = vld [vmem:[%s2 + $0x70] sm:$0xff]
    %v37 = vld [vmem:[%s2 + $0x78] sm:$0xff]
    %v38 = vld [vmem:[%s1] sm:$0xff]
    %v39 = vld [vmem:[%s3] sm:$0x1]
    %v40 = vmul.f32 %v21, %v21
    %vm41 = vcmask 261120
    %v42 = vsel %vm41, %v40, 0.0
    %43 = vadd.xlane.f32.xlu0 %v42
    %v44 = vpop.xlane.xlu0 %43
    %v46 = vsel %vm41, %v21, 0
    %v49 = vsel %vm41, %v22, 0
    %v52 = vsel %vm41, %v23, 0
    %v55 = vsel %vm41, %v24, 0
    %v58 = vsel %vm41, %v25, 0
    %v61 = vsel %vm41, %v26, 0
    %v64 = vsel %vm41, %v27, 0
    %v67 = vsel %vm41, %v28, 0
    %v70 = vsel %vm41, %v29, 0
    %v73 = vsel %vm41, %v30, 0
    %v76 = vsel %vm41, %v31, 0
    %v79 = vsel %vm41, %v32, 0
    %v82 = vsel %vm41, %v33, 0
    %v85 = vsel %vm41, %v34, 0
    %v88 = vsel %vm41, %v35, 0
    %v91 = vsel %vm41, %v36, 0
    %v94 = vsel %vm41, %v37, 0
    %96 = vmatprep.subr.mxu0 0.0
    %97 = vmatpush1.xpose.msra.mxu0 %v49
    %98 = vmatprep.subr.mxu0 0.0
    %99 = vmatpush1.xpose.msra.mxu0 %v52
    %100 = vmatprep.subr.mxu0 0.0
    %101 = vmatpush1.xpose.msra.mxu0 %v55
    %102 = vmatprep.subr.mxu0 0.0
    %103 = vmatpush1.xpose.msra.mxu0 %v58
    %104 = vmatprep.subr.mxu0 0.0
    %105 = vmatpush1.xpose.msra.mxu0 %v61
    %106 = vmatprep.subr.mxu0 0.0
    %107 = vmatpush1.xpose.msra.mxu0 %v64
    %108 = vmatprep.subr.mxu0 0.0
    %109 = vmatpush1.xpose.msra.mxu0 %v67
    %110 = vmatprep.subr.mxu0 0.0
    %111 = vmatpush1.xpose.msra.mxu0 %v70
    %112 = vmatprep.subr.mxu0 0.0
    %113 = vmatpush1.xpose.msra.mxu0 %v73
    %114 = vmatprep.subr.mxu0 0.0
    %115 = vmatpush1.xpose.msra.mxu0 %v76
    %116 = vmatprep.subr.mxu0 0.0
    %117 = vmatpush1.xpose.msra.mxu0 %v79
    %118 = vmatprep.subr.mxu0 0.0
    %119 = vmatpush1.xpose.msra.mxu0 %v82
    %120 = vmatprep.subr.mxu0 0.0
    %121 = vmatpush1.xpose.msra.mxu0 %v85
    %122 = vmatprep.subr.mxu0 0.0
    %123 = vmatpush1.xpose.msra.mxu0 %v88
    %124 = vmatprep.subr.mxu0 0.0
    %125 = vmatpush1.xpose.msra.mxu0 %v91
    %126 = vmatprep.subr.mxu0 0.0
    %127 = vmatpush1.xpose.msra.mxu0 %v94
    %128 = vmatprep.subr.mxu0 0.0
    %129 = vmatpush1.xpose.msra.mxu0 0.0
    %130 = vmatprep.subr.mxu0 0.0
    %131 = vmatpush1.xpose.msra.mxu0 0.0
    %132 = vmatprep.subr.mxu0 0.0
    %133 = vmatpush1.xpose.msra.mxu0 0.0
    %134 = vmatprep.subr.mxu0 0.0
    %135 = vmatpush1.xpose.msra.mxu0 0.0
    %136 = vmatprep.subr.mxu0 0.0
    %137 = vmatpush1.xpose.msra.mxu0 0.0
    %138 = vmatprep.subr.mxu0 0.0
    %139 = vmatpush1.xpose.msra.mxu0 0.0
    %140 = vmatprep.subr.mxu0 0.0
    %141 = vmatpush1.xpose.msra.mxu0 0.0
    %142 = vmatprep.subr.mxu0 0.0
    %143 = vmatpush1.xpose.msra.mxu0 0.0
    %144 = vmatprep.subr.mxu0 0.0
    %145 = vmatpush1.xpose.msra.mxu0 0.0
    %146 = vmatprep.subr.mxu0 0.0
    %147 = vmatpush1.xpose.msra.mxu0 0.0
    %148 = vmatprep.subr.mxu0 0.0
    %149 = vmatpush1.xpose.msra.mxu0 0.0
    %150 = vmatprep.subr.mxu0 0.0
    %151 = vmatpush1.xpose.msra.mxu0 0.0
    %152 = vmatprep.subr.mxu0 0.0
    %153 = vmatpush1.xpose.msra.mxu0 0.0
    %154 = vmatprep.subr.mxu0 0.0
    %155 = vmatpush1.xpose.msra.mxu0 0.0
    %156 = vmatprep.subr.mxu0 0.0
    %157 = vmatpush1.xpose.msra.mxu0 0.0
    %158 = vmatprep.subr.mxu0 0.0
    %159 = vmatpush1.xpose.msra.mxu0 0.0
    %160 = vmatprep.mubr.f32.mxu0 0.0
    %161 = vmatmul.mubr.f32.gmra.mrb[0].mxu0 %v46
    %v162 = vpop.f32.mrb[0].mxu0
    %v163 = vadd.f32 0.0, %v162
    %v164 = vpop.f32.mrb[0].mxu0
    %165 = vdwg.mxu0
    %v166 = vmul.f32 %v163, 2.0
    %v167 = vsub.f32 %v44, %v166
    %v169 = vlaneseq
    %v170 = vshrl.u32 %v169, 7
    %v171 = vsub.s32 0, %v170
    %v172 = vrot.slane %v39, %v171
    %v174 = vadd.f32 %v167, %v172
    %v175 = vmax.f32 %v174, 0.0
    %v176 = vrsqrt.pop %v175
    %v177 = vmul.f32 %v175, %v176
    %vm178 = vcmp.eq.f32.partialorder %v175, inf
    %v179 = vsel %vm178, %v175, %v177
    %vm180 = vcmp.eq.f32.partialorder %v175, 0.0
    %v181 = vand.u32 %v175, 2147483648
    %v182 = vsel %vm180, %v181, %v179
    %v183 = vsub.f32 0.0, %v182
    %184 = vst [vmem:[#allocation4] sm:$0xff] %v183
    %v185 = vlaneseq
    %v186 = vand.u32 %v185, 127
    %vm187 = vcmp.lt.s32.totalorder %v186, 4
    %v188 = vsel %vm187, %v183, -1e+30
    %189 = vmax.xlane.f32.xlu0 %v188
    %v190 = vpop.xlane.xlu0 %189
    %v191 = vsub.f32 %v188, %v190
    %v192 = vmul.f32 %v191, 1.442695
    %v193 = vpow.pop %v192
    %194 = vadd.xlane.f32.xlu0 %v193
    %v195 = vpop.xlane.xlu0 %194
    %v196 = vlog2.pop %v195
    %v197 = vmul.f32 %v196, 0.6931472
    %v198 = vadd.f32 %v190, %v197
    %199 = vset.pattern.permute.xlu0 0
    %200 = vperm.xlu0 %199, %v38
    %v201 = vpop.permute.xlu0 %200
    %vm202 = vcmp.eq.s32.totalorder %v186, %v201
    %v203 = vsel %vm202, 1, 0
    %v204 = vcvt.s32.f32 %v203
    %v205 = vmul.f32 %v182, %v204
    %206 = vadd.xlane.f32.xlu0 %v205
    %v207 = vpop.xlane.xlu0 %206
    %v208 = vadd.f32 %v198, %v207
    %s209 = smul.u32 0, 8
    %v210 = vlaneseq
    %v211 = vshrl.u32 %v210, 7
    %v212 = vstv %s209
    %v213 = vadd.s32 %v212, %v211
    %vm214 = vcmp.lt.s32.totalorder %v213, 8
    %v215 = vsel %vm214, %v208, 0.0
    %v216 = vrot.slane %v215, 4
    %v217 = vadd.f32 %v215, %v216
    %v218 = vrot.slane %v217, 2
    %v219 = vadd.f32 %v217, %v218
    %v220 = vrot.slane %v219, 1
    %v221 = vadd.f32 %v219, %v220
    %222 = vst [vmem:[#allocation2] sm:$0xff] %v221
    // Predicated region
    $region18: #{tpu_custom_call.1} parent=1 // pred_check
      _
    $region19: #{tpu_custom_call.1} parent=1 // pred_check_branch
      %224 = sbr.rel (0) target = $region21
    $region20: #{tpu_custom_call.1} parent=1 // pred_region
      %s226 = ssub.s32 128, 128
      %227 = vsyncadd [#allocation3], %s226
      %s229 = sshll.u32 [#allocation2], 4
      %s230 = int_to_ptr.vmem [resolvable:$true] %s229
      %232 = dma.vmem_to_hbm [thread:$0]  %s230, 128, %s4, [#allocation3]
    $region21: #{tpu_custom_call.1} parent=1 // pred_fallthru
      _
    // Predicated region
    $region22: #{tpu_custom_call.1} parent=1 // pred_check
      _
    $region23: #{tpu_custom_call.1} parent=1 // pred_check_branch
      %234 = sbr.rel (0) target = $region25
    $region24: #{tpu_custom_call.1} parent=1 // pred_region
      %s236 = ssub.s32 128, 128
      %237 = vsyncadd [#allocation5], %s236
      %s239 = sshll.u32 [#allocation4], 4
      %s240 = int_to_ptr.vmem [resolvable:$true] %s239
      %242 = dma.vmem_to_hbm [thread:$0]  %s240, 128, %s5, [#allocation5]
    $region25: #{tpu_custom_call.1} parent=1 // pred_fallthru
      _
    // Predicated region
    $region26: #{tpu_custom_call.1} parent=1 // pred_check
      _
    $region27: #{tpu_custom_call.1} parent=1 // pred_check_branch
      %244 = sbr.rel (0) target = $region29
    $region28: #{tpu_custom_call.1} parent=1 // pred_region
      %245 = dma.done [#allocation3], 128
    $region29: #{tpu_custom_call.1} parent=1 // pred_fallthru
      _
    // Predicated region
    $region30: #{tpu_custom_call.1} parent=1 // pred_check
      _
    $region31: #{tpu_custom_call.1} parent=1 // pred_check_branch
      %247 = sbr.rel (0) target = $region33
    $region32: #{tpu_custom_call.1} parent=1 // pred_region
      %248 = dma.done [#allocation5], 128
    $region33: #{tpu_custom_call.1} parent=1 // pred_fallthru
      _
    %249 = vsyncpa [#allocation3], 1
    %250 = vsyncpa [#allocation5], 1

</llo_original>
